<compile_context>
chip_gen: v6e
topology: v6e:2x2x1
jax: 0.10.0
libtpu: 0.0.40
codegen_flags: <defaults>
</compile_context>

<pallas_src>
import functools

import jax
import jax.numpy as jnp
from jax.experimental import pallas as pl
from jax.experimental.pallas import tpu as pltpu


def _rvq_kernel(x_ref, emb_ref, esq_ref, idx_ref, *, n_q, codebook_size):
    # x_ref:   (TM, D)      f32  residual rows for this grid block
    # emb_ref: (n_q, K, D)  f32  codebooks of the first n_q quantizers (VMEM-resident)
    # esq_ref: (n_q, K)     f32  0.5 * ||embed||^2 per code
    # idx_ref: (TM, n_q)    i32  selected code per row per quantizer
    residual = x_ref[...].astype(jnp.float32)
    tm = residual.shape[0]
    n_codes = codebook_size

    lane_iota_k = jax.lax.broadcasted_iota(jnp.int32, (tm, n_codes), 1)
    lane_iota_n = jax.lax.broadcasted_iota(jnp.int32, (tm, n_q), 1)
    esq = esq_ref[...]                                     # (n_q, K)
    idx_out = jnp.zeros((tm, n_q), jnp.int32)

    for q in range(n_q):                                   # small static unroll
        embed = emb_ref[q]                                 # (K, D)
        # scores[r, c] = residual[r] . embed[c]   (rhs-transposed matmul, MXU)
        scores = jax.lax.dot_general(
            residual, embed,
            dimension_numbers=(((1,), (1,)), ((), ())),
            preferred_element_type=jnp.float32)            # (TM, K)
        # argmax(dist) == argmin ||residual - embed||^2
        dist = scores - esq[q:q + 1, :]
        best = jnp.max(dist, axis=1, keepdims=True)        # (TM, 1)
        # first index attaining the max (matches torch .max().indices tie rule)
        idx = jnp.min(jnp.where(dist >= best, lane_iota_k, n_codes),
                      axis=1, keepdims=True)               # (TM, 1) int32
        one_hot = (lane_iota_k == idx).astype(jnp.float32)           # (TM, K)
        quantized = jnp.dot(one_hot, embed,
                            preferred_element_type=jnp.float32)      # (TM, D) exact rows
        residual = residual - quantized
        idx_out = jnp.where(lane_iota_n == q, idx, idx_out)

    idx_ref[...] = idx_out


def residual_vq_forward(x, embeds, n):
    """x: (B, T, D) f32; embeds: (num_q, K, D) f32; n: static int.

    Returns int32 codes of shape (n, B, T) == torch.stack(indices, dim=0).
    """
    B, T, D = x.shape
    num_q, K, D2 = embeds.shape
    assert D == D2 and 0 < n <= num_q
    N = B * T

    xf = x.reshape(N, D)
    emb = embeds[:n]                                       # (n, K, D)
    esq = 0.5 * jnp.sum(emb * emb, axis=-1)                # (n, K), tiny weight prep

    # Row tiling: two "parallel" blocks feed both v7x TensorCores; fall back to
    # a single full block when the row count is too small / not 8-aligned.
    tm = N
    if N % 16 == 0 and (N // 2) % 8 == 0:
        tm = N // 2
    grid = (N // tm,)

    kernel = functools.partial(_rvq_kernel, n_q=n, codebook_size=K)
    idx = pl.pallas_call(
        kernel,
        out_shape=jax.ShapeDtypeStruct((N, n), jnp.int32),
        grid=grid,
        in_specs=[
            pl.BlockSpec((tm, D), lambda r: (r, 0)),
            pl.BlockSpec((n, K, D), lambda r: (0, 0, 0)),   # constant: loaded once
            pl.BlockSpec((n, K), lambda r: (0, 0)),
        ],
        out_specs=pl.BlockSpec((tm, n), lambda r: (r, 0)),
        compiler_params=pltpu.CompilerParams(
            dimension_semantics=("parallel",)),
    )(xf, emb, esq)

    return idx.T.reshape(n, B, T)


if __name__ == "__main__":
    key = jax.random.PRNGKey(0)
    k_x, k_e = jax.random.split(key)

    B, T, DIM = 2, 16, 128
    CODEBOOK_SIZE = 256
    NUM_QUANTIZERS = 8
    N_ACTIVE = 4

    x = jax.random.normal(k_x, (B, T, DIM), jnp.float32)
    embeds = jax.random.normal(
        k_e, (NUM_QUANTIZERS, CODEBOOK_SIZE, DIM), jnp.float32)

    fwd = jax.jit(residual_vq_forward, static_argnums=2)
    codes = jax.block_until_ready(fwd(x, embeds, N_ACTIVE))

    assert codes.shape == (N_ACTIVE, B, T), codes.shape
    assert codes.dtype == jnp.int32
    assert bool(jnp.all((codes >= 0) & (codes < CODEBOOK_SIZE)))

    # Reference check (plain JAX, brute-force torch-style distances): at every
    # quantizer step the selected code must be (numerically) a nearest code.
    residual = x
    for q in range(N_ACTIVE):
        e = embeds[q]                                                  # (K, D)
        d = jnp.sum((residual[:, :, None, :] - e[None, None, :, :]) ** 2,
                    axis=-1)                                           # (B, T, K)
        sel = codes[q]                                                 # (B, T)
        d_sel = jnp.take_along_axis(d, sel[..., None], axis=-1)[..., 0]
        d_min = jnp.min(d, axis=-1)
        assert bool(jnp.all(d_sel <= d_min + 1e-3 * (1.0 + d_min)))
        residual = residual - e[sel]

    print("KERNEL_OK")
</pallas_src>

<mosaic_0001>
module attributes {stable_mosaic.version = 11 : i64} {
  func.func @_rvq_kernel(%arg0: i32, %arg1: memref<16x128xf32, #tpu.memory_space<vmem>>, %arg2: memref<4x256x128xf32, #tpu.memory_space<vmem>>, %arg3: memref<4x256xf32, #tpu.memory_space<vmem>>, %arg4: memref<16x4xi32, #tpu.memory_space<vmem>>) attributes {dimension_semantics = [#tpu.dimension_semantics<parallel>], iteration_bounds = array<i64: 2>, scalar_prefetch = 0 : i64, scratch_operands = 0 : i64, tpu.core_type = #tpu.core_type<tc>, window_params = [{transform_indices = @transform_0, window_bounds = array<i64: 16, 128>}, {pipeline_mode = #tpu.pipeline_mode<synchronous>, transform_indices = @transform_1, window_bounds = array<i64: 4, 256, 128>}, {pipeline_mode = #tpu.pipeline_mode<synchronous>, transform_indices = @transform_2, window_bounds = array<i64: 4, 256>}, {transform_indices = @transform_3, window_bounds = array<i64: 16, 4>}]} {
    %c0 = arith.constant 0 : index
    %c0_0 = arith.constant 0 : index
    %0 = vector.load %arg1[%c0, %c0_0] : memref<16x128xf32, #tpu.memory_space<vmem>>, vector<16x128xf32>
    %1 = tpu.iota {dimensions = array<i32: 1>} : vector<16x256xi32>
    %2 = tpu.iota {dimensions = array<i32: 1>} : vector<16x4xi32>
    %c0_1 = arith.constant 0 : index
    %c0_2 = arith.constant 0 : index
    %3 = vector.load %arg3[%c0_1, %c0_2] : memref<4x256xf32, #tpu.memory_space<vmem>>, vector<4x256xf32>
    %c0_i32 = arith.constant 0 : i32
    %4 = vector.broadcast %c0_i32 : i32 to vector<16x4xi32>
    %c0_3 = arith.constant 0 : index
    %c0_4 = arith.constant 0 : index
    %c0_5 = arith.constant 0 : index
    %5 = vector.load %arg2[%c0_3, %c0_4, %c0_5] : memref<4x256x128xf32, #tpu.memory_space<vmem>>, vector<1x256x128xf32>
    %6 = vector.shape_cast %5 : vector<1x256x128xf32> to vector<256x128xf32>
    %cst = arith.constant dense<0.000000e+00> : vector<16x256xf32>
    %7 = tpu.matmul %0, %6, %cst {dimension_numbers = #tpu.dot_dimension_numbers<[1], [1], [0], [0], [0, 0, 1, 0], [], []>} : vector<16x128xf32>, vector<256x128xf32>, vector<16x256xf32> -> vector<16x256xf32>
    %8 = vector.extract_strided_slice %3 {offsets = [0, 0], sizes = [1, 256], strides = [1, 1]} : vector<4x256xf32> to vector<1x256xf32>
    %9 = vector.broadcast %8 : vector<1x256xf32> to vector<16x256xf32>
    %10 = arith.subf %7, %9 : vector<16x256xf32>
    %cst_6 = arith.constant dense<0xFF800000> : vector<16xf32>
    %11 = vector.multi_reduction <maximumf>, %10, %cst_6 [1] : vector<16x256xf32> to vector<16xf32>
    %12 = vector.shape_cast %11 : vector<16xf32> to vector<16x1xf32>
    %13 = vector.broadcast %12 : vector<16x1xf32> to vector<16x256xf32>
    %14 = arith.cmpf oge, %10, %13 : vector<16x256xf32>
    %c256_i32 = arith.constant 256 : i32
    %15 = vector.broadcast %c256_i32 : i32 to vector<16x256xi32>
    %16 = arith.select %14, %1, %15 : vector<16x256xi1>, vector<16x256xi32>
    %cst_7 = arith.constant dense<2147483647> : vector<16xi32>
    %17 = vector.multi_reduction <minsi>, %16, %cst_7 [1] : vector<16x256xi32> to vector<16xi32>
    %18 = vector.shape_cast %17 : vector<16xi32> to vector<16x1xi32>
    %19 = vector.broadcast %18 : vector<16x1xi32> to vector<16x256xi32>
    %20 = arith.cmpi eq, %1, %19 : vector<16x256xi32>
    %21 = arith.extui %20 : vector<16x256xi1> to vector<16x256xi32>
    %22 = arith.sitofp %21 : vector<16x256xi32> to vector<16x256xf32>
    %cst_8 = arith.constant dense<0.000000e+00> : vector<16x128xf32>
    %23 = tpu.matmul %22, %6, %cst_8 {dimension_numbers = #tpu.dot_dimension_numbers<[1], [0], [0], [1], [0, 0, 1, 1], [], []>} : vector<16x256xf32>, vector<256x128xf32>, vector<16x128xf32> -> vector<16x128xf32>
    %24 = arith.subf %0, %23 : vector<16x128xf32>
    %c0_i32_9 = arith.constant 0 : i32
    %25 = vector.broadcast %c0_i32_9 : i32 to vector<16x4xi32>
    %26 = arith.cmpi eq, %2, %25 : vector<16x4xi32>
    %27 = vector.shape_cast %18 : vector<16x1xi32> to vector<16x1xi32>
    %28 = vector.broadcast %27 : vector<16x1xi32> to vector<16x4xi32>
    %29 = arith.select %26, %28, %4 : vector<16x4xi1>, vector<16x4xi32>
    %c1 = arith.constant 1 : index
    %c0_10 = arith.constant 0 : index
    %c0_11 = arith.constant 0 : index
    %30 = vector.load %arg2[%c1, %c0_10, %c0_11] : memref<4x256x128xf32, #tpu.memory_space<vmem>>, vector<1x256x128xf32>
    %31 = vector.shape_cast %30 : vector<1x256x128xf32> to vector<256x128xf32>
    %cst_12 = arith.constant dense<0.000000e+00> : vector<16x256xf32>
    %32 = tpu.matmul %24, %31, %cst_12 {dimension_numbers = #tpu.dot_dimension_numbers<[1], [1], [0], [0], [0, 0, 1, 0], [], []>} : vector<16x128xf32>, vector<256x128xf32>, vector<16x256xf32> -> vector<16x256xf32>
    %33 = vector.extract_strided_slice %3 {offsets = [1, 0], sizes = [1, 256], strides = [1, 1]} : vector<4x256xf32> to vector<1x256xf32>
    %34 = vector.broadcast %33 : vector<1x256xf32> to vector<16x256xf32>
    %35 = arith.subf %32, %34 : vector<16x256xf32>
    %cst_13 = arith.constant dense<0xFF800000> : vector<16xf32>
    %36 = vector.multi_reduction <maximumf>, %35, %cst_13 [1] : vector<16x256xf32> to vector<16xf32>
    %37 = vector.shape_cast %36 : vector<16xf32> to vector<16x1xf32>
    %38 = vector.broadcast %37 : vector<16x1xf32> to vector<16x256xf32>
    %39 = arith.cmpf oge, %35, %38 : vector<16x256xf32>
    %c256_i32_14 = arith.constant 256 : i32
    %40 = vector.broadcast %c256_i32_14 : i32 to vector<16x256xi32>
    %41 = arith.select %39, %1, %40 : vector<16x256xi1>, vector<16x256xi32>
    %cst_15 = arith.constant dense<2147483647> : vector<16xi32>
    %42 = vector.multi_reduction <minsi>, %41, %cst_15 [1] : vector<16x256xi32> to vector<16xi32>
    %43 = vector.shape_cast %42 : vector<16xi32> to vector<16x1xi32>
    %44 = vector.broadcast %43 : vector<16x1xi32> to vector<16x256xi32>
    %45 = arith.cmpi eq, %1, %44 : vector<16x256xi32>
    %46 = arith.extui %45 : vector<16x256xi1> to vector<16x256xi32>
    %47 = arith.sitofp %46 : vector<16x256xi32> to vector<16x256xf32>
    %cst_16 = arith.constant dense<0.000000e+00> : vector<16x128xf32>
    %48 = tpu.matmul %47, %31, %cst_16 {dimension_numbers = #tpu.dot_dimension_numbers<[1], [0], [0], [1], [0, 0, 1, 1], [], []>} : vector<16x256xf32>, vector<256x128xf32>, vector<16x128xf32> -> vector<16x128xf32>
    %49 = arith.subf %24, %48 : vector<16x128xf32>
    %c1_i32 = arith.constant 1 : i32
    %50 = vector.broadcast %c1_i32 : i32 to vector<16x4xi32>
    %51 = arith.cmpi eq, %2, %50 : vector<16x4xi32>
    %52 = vector.shape_cast %43 : vector<16x1xi32> to vector<16x1xi32>
    %53 = vector.broadcast %52 : vector<16x1xi32> to vector<16x4xi32>
    %54 = arith.select %51, %53, %29 : vector<16x4xi1>, vector<16x4xi32>
    %c2 = arith.constant 2 : index
    %c0_17 = arith.constant 0 : index
    %c0_18 = arith.constant 0 : index
    %55 = vector.load %arg2[%c2, %c0_17, %c0_18] : memref<4x256x128xf32, #tpu.memory_space<vmem>>, vector<1x256x128xf32>
    %56 = vector.shape_cast %55 : vector<1x256x128xf32> to vector<256x128xf32>
    %cst_19 = arith.constant dense<0.000000e+00> : vector<16x256xf32>
    %57 = tpu.matmul %49, %56, %cst_19 {dimension_numbers = #tpu.dot_dimension_numbers<[1], [1], [0], [0], [0, 0, 1, 0], [], []>} : vector<16x128xf32>, vector<256x128xf32>, vector<16x256xf32> -> vector<16x256xf32>
    %58 = vector.extract_strided_slice %3 {offsets = [2, 0], sizes = [1, 256], strides = [1, 1]} : vector<4x256xf32> to vector<1x256xf32>
    %59 = vector.broadcast %58 : vector<1x256xf32> to vector<16x256xf32>
    %60 = arith.subf %57, %59 : vector<16x256xf32>
    %cst_20 = arith.constant dense<0xFF800000> : vector<16xf32>
    %61 = vector.multi_reduction <maximumf>, %60, %cst_20 [1] : vector<16x256xf32> to vector<16xf32>
    %62 = vector.shape_cast %61 : vector<16xf32> to vector<16x1xf32>
    %63 = vector.broadcast %62 : vector<16x1xf32> to vector<16x256xf32>
    %64 = arith.cmpf oge, %60, %63 : vector<16x256xf32>
    %c256_i32_21 = arith.constant 256 : i32
    %65 = vector.broadcast %c256_i32_21 : i32 to vector<16x256xi32>
    %66 = arith.select %64, %1, %65 : vector<16x256xi1>, vector<16x256xi32>
    %cst_22 = arith.constant dense<2147483647> : vector<16xi32>
    %67 = vector.multi_reduction <minsi>, %66, %cst_22 [1] : vector<16x256xi32> to vector<16xi32>
    %68 = vector.shape_cast %67 : vector<16xi32> to vector<16x1xi32>
    %69 = vector.broadcast %68 : vector<16x1xi32> to vector<16x256xi32>
    %70 = arith.cmpi eq, %1, %69 : vector<16x256xi32>
    %71 = arith.extui %70 : vector<16x256xi1> to vector<16x256xi32>
    %72 = arith.sitofp %71 : vector<16x256xi32> to vector<16x256xf32>
    %cst_23 = arith.constant dense<0.000000e+00> : vector<16x128xf32>
    %73 = tpu.matmul %72, %56, %cst_23 {dimension_numbers = #tpu.dot_dimension_numbers<[1], [0], [0], [1], [0, 0, 1, 1], [], []>} : vector<16x256xf32>, vector<256x128xf32>, vector<16x128xf32> -> vector<16x128xf32>
    %74 = arith.subf %49, %73 : vector<16x128xf32>
    %c2_i32 = arith.constant 2 : i32
    %75 = vector.broadcast %c2_i32 : i32 to vector<16x4xi32>
    %76 = arith.cmpi eq, %2, %75 : vector<16x4xi32>
    %77 = vector.shape_cast %68 : vector<16x1xi32> to vector<16x1xi32>
    %78 = vector.broadcast %77 : vector<16x1xi32> to vector<16x4xi32>
    %79 = arith.select %76, %78, %54 : vector<16x4xi1>, vector<16x4xi32>
    %c3 = arith.constant 3 : index
    %c0_24 = arith.constant 0 : index
    %c0_25 = arith.constant 0 : index
    %80 = vector.load %arg2[%c3, %c0_24, %c0_25] : memref<4x256x128xf32, #tpu.memory_space<vmem>>, vector<1x256x128xf32>
    %81 = vector.shape_cast %80 : vector<1x256x128xf32> to vector<256x128xf32>
    %cst_26 = arith.constant dense<0.000000e+00> : vector<16x256xf32>
    %82 = tpu.matmul %74, %81, %cst_26 {dimension_numbers = #tpu.dot_dimension_numbers<[1], [1], [0], [0], [0, 0, 1, 0], [], []>} : vector<16x128xf32>, vector<256x128xf32>, vector<16x256xf32> -> vector<16x256xf32>
    %83 = vector.extract_strided_slice %3 {offsets = [3, 0], sizes = [1, 256], strides = [1, 1]} : vector<4x256xf32> to vector<1x256xf32>
    %84 = vector.broadcast %83 : vector<1x256xf32> to vector<16x256xf32>
    %85 = arith.subf %82, %84 : vector<16x256xf32>
    %cst_27 = arith.constant dense<0xFF800000> : vector<16xf32>
    %86 = vector.multi_reduction <maximumf>, %85, %cst_27 [1] : vector<16x256xf32> to vector<16xf32>
    %87 = vector.shape_cast %86 : vector<16xf32> to vector<16x1xf32>
    %88 = vector.broadcast %87 : vector<16x1xf32> to vector<16x256xf32>
    %89 = arith.cmpf oge, %85, %88 : vector<16x256xf32>
    %c256_i32_28 = arith.constant 256 : i32
    %90 = vector.broadcast %c256_i32_28 : i32 to vector<16x256xi32>
    %91 = arith.select %89, %1, %90 : vector<16x256xi1>, vector<16x256xi32>
    %cst_29 = arith.constant dense<2147483647> : vector<16xi32>
    %92 = vector.multi_reduction <minsi>, %91, %cst_29 [1] : vector<16x256xi32> to vector<16xi32>
    %93 = vector.shape_cast %92 : vector<16xi32> to vector<16x1xi32>
    %c3_i32 = arith.constant 3 : i32
    %94 = vector.broadcast %c3_i32 : i32 to vector<16x4xi32>
    %95 = arith.cmpi eq, %2, %94 : vector<16x4xi32>
    %96 = vector.shape_cast %93 : vector<16x1xi32> to vector<16x1xi32>
    %97 = vector.broadcast %96 : vector<16x1xi32> to vector<16x4xi32>
    %98 = arith.select %95, %97, %79 : vector<16x4xi1>, vector<16x4xi32>
    %c0_30 = arith.constant 0 : index
    %c0_31 = arith.constant 0 : index
    %99 = vector.load %arg4[%c0_30, %c0_31] : memref<16x4xi32, #tpu.memory_space<vmem>>, vector<16x4xi32>
    tpu.vector_store %arg4[%c0_30, %c0_31], %98 {strides = array<i32>} : memref<16x4xi32, #tpu.memory_space<vmem>>, vector<16x4xi32>,
    return
  }
  func.func @transform_0(%arg0: i32) -> (i32, i32) {
    %c0_i32 = arith.constant 0 : i32
    %c0_i32_0 = arith.constant 0 : i32
    return %arg0, %c0_i32 : i32, i32
  }
  func.func @transform_1(%arg0: i32) -> (i32, i32, i32) {
    %c0_i32 = arith.constant 0 : i32
    %c0_i32_0 = arith.constant 0 : i32
    %c0_i32_1 = arith.constant 0 : i32
    %c0_i32_2 = arith.constant 0 : i32
    return %c0_i32, %c0_i32_0, %c0_i32_1 : i32, i32, i32
  }
  func.func @transform_2(%arg0: i32) -> (i32, i32) {
    %c0_i32 = arith.constant 0 : i32
    %c0_i32_0 = arith.constant 0 : i32
    %c0_i32_1 = arith.constant 0 : i32
    return %c0_i32, %c0_i32_0 : i32, i32
  }
  func.func @transform_3(%arg0: i32) -> (i32, i32) {
    %c0_i32 = arith.constant 0 : i32
    %c0_i32_0 = arith.constant 0 : i32
    return %arg0, %c0_i32 : i32, i32
  }
}

</mosaic_0001>

<llo_original>
// kernel: residual_vq_forward.1
$region0: #{residual_vq_forward.1}
  #allocation0 [shape = 'u32[]', space=smem, size = 0x4, offset = 0x4, fixed_abs, tag = 'smem constant byte address 0x4 - core index']
  #allocation1 [shape = 'u32[144,128]{1,0:T(1,128)}', space=vmem, size = 0x12000, scoped, tag = 'internal scratch']
  %s0 = inlined_call_operand.vmem [shape: f32[32,128], index: 0, kind: input, shape index: {}]
  %s1 = inlined_call_operand.vmem [shape: f32[4,256,128], index: 1, kind: input, shape index: {}]
  %s2 = inlined_call_operand.vmem [shape: f32[4,256], index: 2, kind: input, shape index: {}]
  %s3 = inlined_call_operand.vmem [shape: s32[32,4], index: 3, kind: output, shape index: {}]
  %s4 = sld [smem:[#allocation0]]
  $region45: #{residual_vq_forward.1} parent=0
    _
  %s6 = ssub.s32 1, %s4
  %s7 = scalar_select 0, %s6, %s4
  loop: start=0, step=1, limit=4
  $region2: #{residual_vq_forward.1} parent=0 // loop_pre_header
    _
  $region3: #{residual_vq_forward.1} parent=0 // loop_header
    %s9 = sphi 0, %s13
    %p10 = scmp.ge.s32.totalorder %s9, 4
    %s19 = sphi 0, %s21
    %s22 = sphi 0, %s19
    %s23 = sphi 0, %s22
    %s39 = sphi 0, %s23
    %s43 = sphi 0, %s43
    %s45 = sphi 0, %s43
    %s46 = sphi 0, %s45
    %s60 = sphi 0, %s46
    %s64 = sphi 0, %s64
    %s66 = sphi 0, %s64
    %s67 = sphi 0, %s66
    %s81 = sphi 0, %s67
    %s87 = sphi 0, %s89
    %s90 = sphi 0, %s87
    %s91 = sphi 0, %s90
    %s107 = sphi 0, %s91
  $region4: #{residual_vq_forward.1} parent=0 // loop_header_branch
    %12 = sbr.rel (%p10) target = $region8
  $region5: #{residual_vq_forward.1} parent=0 // loop_body
    %s14 = ssub.s32 %s9, 1
    %s15 = ssub.s32 %s9, 2
    %s16 = sadd.s32 %s9, 1
    %s17 = ssub.s32 %s9, %s16
    %p18 = scmp.eq.s32.totalorder %s17, 0
    %s20 = sadd.s32 %s19, 1
    %s21 = scalar_select %p18, %s19, %s20
    %p24 = pneg %p18
    %p25 = scmp.eq.s32.totalorder %s9, 1
    %p26 = por %p24, %p25
    %p27 = scmp.ne.s32.totalorder %s19, %s22
    %p28 = scmp.eq.s32.totalorder %s9, 0
    %p29 = por %p27, %p28
    %p30 = scmp.ne.s32.totalorder %s19, %s22
    %p31 = scmp.eq.s32.totalorder %s14, 1
    %p32 = por %p30, %p31
    %p33 = scmp.ne.s32.totalorder %s22, %s23
    %p34 = scmp.eq.s32.totalorder %s14, 0
    %p35 = por %p33, %p34
    %p36 = scmp.ne.s32.totalorder %s22, %s23
    %p37 = scmp.eq.s32.totalorder %s15, 1
    %p38 = por %p36, %p37
    %p40 = scmp.ne.s32.totalorder %s23, %s39
    %p41 = scmp.eq.s32.totalorder %s15, 0
    %p42 = por %p40, %p41
    %s44 = sadd.s32 %s43, 1
    %p47 = scmp.eq.s32.totalorder %s9, 1
    %p48 = scmp.ne.s32.totalorder %s43, %s45
    %p49 = scmp.eq.s32.totalorder %s9, 0
    %p50 = por %p48, %p49
    %p51 = scmp.ne.s32.totalorder %s43, %s45
    %p52 = scmp.eq.s32.totalorder %s14, 1
    %p53 = por %p51, %p52
    %p54 = scmp.ne.s32.totalorder %s45, %s46
    %p55 = scmp.eq.s32.totalorder %s14, 0
    %p56 = por %p54, %p55
    %p57 = scmp.ne.s32.totalorder %s45, %s46
    %p58 = scmp.eq.s32.totalorder %s15, 1
    %p59 = por %p57, %p58
    %p61 = scmp.ne.s32.totalorder %s46, %s60
    %p62 = scmp.eq.s32.totalorder %s15, 0
    %p63 = por %p61, %p62
    %s65 = sadd.s32 %s64, 1
    %p68 = scmp.eq.s32.totalorder %s9, 1
    %p69 = scmp.ne.s32.totalorder %s64, %s66
    %p70 = scmp.eq.s32.totalorder %s9, 0
    %p71 = por %p69, %p70
    %p72 = scmp.ne.s32.totalorder %s64, %s66
    %p73 = scmp.eq.s32.totalorder %s14, 1
    %p74 = por %p72, %p73
    %p75 = scmp.ne.s32.totalorder %s66, %s67
    %p76 = scmp.eq.s32.totalorder %s14, 0
    %p77 = por %p75, %p76
    %p78 = scmp.ne.s32.totalorder %s66, %s67
    %p79 = scmp.eq.s32.totalorder %s15, 1
    %p80 = por %p78, %p79
    %p82 = scmp.ne.s32.totalorder %s67, %s81
    %p83 = scmp.eq.s32.totalorder %s15, 0
    %p84 = por %p82, %p83
    %s85 = ssub.s32 %s9, %s16
    %p86 = scmp.eq.s32.totalorder %s85, 0
    %s88 = sadd.s32 %s87, 1
    %s89 = scalar_select %p86, %s87, %s88
    %p92 = pneg %p86
    %p93 = scmp.eq.s32.totalorder %s9, 1
    %p94 = por %p92, %p93
    %p95 = scmp.ne.s32.totalorder %s87, %s90
    %p96 = scmp.eq.s32.totalorder %s9, 0
    %p97 = por %p95, %p96
    %p98 = scmp.ne.s32.totalorder %s87, %s90
    %p99 = scmp.eq.s32.totalorder %s14, 1
    %p100 = por %p98, %p99
    %p101 = scmp.ne.s32.totalorder %s90, %s91
    %p102 = scmp.eq.s32.totalorder %s14, 0
    %p103 = por %p101, %p102
    %p104 = scmp.ne.s32.totalorder %s90, %s91
    %p105 = scmp.eq.s32.totalorder %s15, 1
    %p106 = por %p104, %p105
    %p108 = scmp.ne.s32.totalorder %s91, %s107
    %p109 = scmp.eq.s32.totalorder %s15, 0
    %p110 = por %p108, %p109
    %p111 = scmp.le.s32.totalorder 1, %s9
    %p112 = scmp.lt.s32.totalorder %s9, 3
    %p113 = pnand %p111, %p112
    %p114 = pneg %p113
    // Predicated region
    $region9: #{residual_vq_forward.1} parent=5 // pred_check
      _
    $region10: #{residual_vq_forward.1} parent=5 // pred_check_branch
      %116 = sbr.rel (%p113) target = $region12
    $region11: #{residual_vq_forward.1} parent=5 // pred_region
      %s117 = ssub.s32 %s9, 1
      // Predicated region
      $region13: #{residual_vq_forward.1} parent=11 // pred_check
        %p118 = pneg %p56
      $region14: #{residual_vq_forward.1} parent=11 // pred_check_branch
        %120 = sbr.rel (%p118) target = $region16
      $region15: #{residual_vq_forward.1} parent=11 // pred_region
        _
      $region16: #{residual_vq_forward.1} parent=11 // pred_fallthru
        _
      // Predicated region
      $region17: #{residual_vq_forward.1} parent=11 // pred_check
        %p121 = pneg %p77
      $region18: #{residual_vq_forward.1} parent=11 // pred_check_branch
        %123 = sbr.rel (%p121) target = $region20
      $region19: #{residual_vq_forward.1} parent=11 // pred_region
        _
      $region20: #{residual_vq_forward.1} parent=11 // pred_fallthru
        _
    $region12: #{residual_vq_forward.1} parent=5 // pred_fallthru
      _
    %p124 = scmp.lt.s32.totalorder %s9, 2
    // Predicated region
    $region21: #{residual_vq_forward.1} parent=5 // pred_check
      %p125 = pneg %p124
    $region22: #{residual_vq_forward.1} parent=5 // pred_check_branch
      %127 = sbr.rel (%p125) target = $region24
    $region23: #{residual_vq_forward.1} parent=5 // pred_region
      // Predicated region
      $region25: #{residual_vq_forward.1} parent=23 // pred_check
        %p128 = pneg %p29
      $region26: #{residual_vq_forward.1} parent=23 // pred_check_branch
        %130 = sbr.rel (%p128) target = $region28
      $region27: #{residual_vq_forward.1} parent=23 // pred_region
        %s131 = smul.u32 2, %s9
        %p132 = scmp.lt.s32.totalorder %s131, 3
        %s133 = scalar_select %p132, %s131, 3
        %s134 = smul.addr %s133, 8
        %s135 = scalar_lea.vmem %s0, %s134
        %s136 = smul.u32 2, %s9
      $region28: #{residual_vq_forward.1} parent=23 // pred_fallthru
        _
    $region24: #{residual_vq_forward.1} parent=5 // pred_fallthru
      _
    %p137 = scmp.le.s32.totalorder 1, %s9
    %p138 = scmp.lt.s32.totalorder %s9, 3
    %p139 = pnand %p137, %p138
    %p140 = pneg %p139
    // Predicated region
    $region29: #{residual_vq_forward.1} parent=5 // pred_check
      _
    $region30: #{residual_vq_forward.1} parent=5 // pred_check_branch
      %142 = sbr.rel (%p139) target = $region32
    $region31: #{residual_vq_forward.1} parent=5 // pred_region
      %s143 = ssub.s32 %s9, 1
      %s144 = smul.u32 2, %s14
      %p145 = scmp.lt.s32.totalorder %s144, 3
      %s146 = scalar_select %p145, %s144, 3
      %s147 = smul.addr %s146, 8
      %s148 = scalar_lea.vmem %s0, %s147
      %p149 = pneg %p35
      %p150 = pneg %p32
      %p151 = pneg %p56
      %p152 = pneg %p53
      %p153 = pneg %p77
      %p154 = pneg %p74
      %p155 = pneg %p103
      %p156 = pneg %p100
      %s157 = smul.u32 2, %s14
      %p158 = scmp.lt.s32.totalorder %s157, 3
      %s159 = scalar_select %p158, %s157, 3
      %s160 = smul.addr %s159, 8
      %s161 = scalar_lea.vmem %s3, %s160
      %s162 = smul.u32 2, %s14
      %p163 = scmp.lt.s32.totalorder %s162, 3
      %s164 = scalar_select %p163, %s162, 3
      %s165 = smul.addr %s164, 8
      %s166 = scalar_lea.vmem %s0, %s165
      %s167 = smul.u32 2, %s14
      %s168 = smul.u32 2, %s14
      %p169 = scmp.lt.s32.totalorder %s168, 3
      %s170 = scalar_select %p169, %s168, 3
      %s171 = smul.addr %s170, 8
      %s172 = scalar_lea.vmem %s3, %s171
      %s173 = smul.u32 2, %s14
      %v174 = vld [vmem:[%s166] sm:$0xff]
      %v175 = vld [vmem:[%s166 + $0x8] sm:$0xff]
      %v176 = vlaneseq
      %v177 = vand.u32 %v176, 127
      %v178 = vadd.s32 %v177, 128
      %v179 = vld [vmem:[%s2] sm:$0xff]
      %v180 = vld [vmem:[%s1] sm:$0xff]
      %v181 = vld [vmem:[%s1 + $0x8] sm:$0xff]
      %v182 = vld [vmem:[%s1 + $0x10] sm:$0xff]
      %v183 = vld [vmem:[%s1 + $0x18] sm:$0xff]
      %v184 = vld [vmem:[%s1 + $0x20] sm:$0xff]
      %v185 = vld [vmem:[%s1 + $0x28] sm:$0xff]
      %v186 = vld [vmem:[%s1 + $0x30] sm:$0xff]
      %v187 = vld [vmem:[%s1 + $0x38] sm:$0xff]
      %v188 = vld [vmem:[%s1 + $0x40] sm:$0xff]
      %v189 = vld [vmem:[%s1 + $0x48] sm:$0xff]
      %v190 = vld [vmem:[%s1 + $0x50] sm:$0xff]
      %v191 = vld [vmem:[%s1 + $0x58] sm:$0xff]
      %v192 = vld [vmem:[%s1 + $0x60] sm:$0xff]
      %v193 = vld [vmem:[%s1 + $0x68] sm:$0xff]
      %v194 = vld [vmem:[%s1 + $0x70] sm:$0xff]
      %v195 = vld [vmem:[%s1 + $0x78] sm:$0xff]
      %v196 = vld [vmem:[%s1 + $0x80] sm:$0xff]
      %v197 = vld [vmem:[%s1 + $0x88] sm:$0xff]
      %v198 = vld [vmem:[%s1 + $0x90] sm:$0xff]
      %v199 = vld [vmem:[%s1 + $0x98] sm:$0xff]
      %v200 = vld [vmem:[%s1 + $0xa0] sm:$0xff]
      %v201 = vld [vmem:[%s1 + $0xa8] sm:$0xff]
      %v202 = vld [vmem:[%s1 + $0xb0] sm:$0xff]
      %v203 = vld [vmem:[%s1 + $0xb8] sm:$0xff]
      %v204 = vld [vmem:[%s1 + $0xc0] sm:$0xff]
      %v205 = vld [vmem:[%s1 + $0xc8] sm:$0xff]
      %v206 = vld [vmem:[%s1 + $0xd0] sm:$0xff]
      %v207 = vld [vmem:[%s1 + $0xd8] sm:$0xff]
      %v208 = vld [vmem:[%s1 + $0xe0] sm:$0xff]
      %v209 = vld [vmem:[%s1 + $0xe8] sm:$0xff]
      %v210 = vld [vmem:[%s1 + $0xf0] sm:$0xff]
      %v211 = vld [vmem:[%s1 + $0xf8] sm:$0xff]
      %212 = vmatprep.subr.mxu0 0.0
      %213 = vmatpush1.xpose.msra.mxu0 %v195
      %214 = vmatprep.subr.mxu0 0.0
      %215 = vmatpush1.xpose.msra.mxu0 %v194
      %216 = vmatprep.subr.mxu0 0.0
      %217 = vmatpush1.xpose.msra.mxu0 %v193
      %218 = vmatprep.subr.mxu0 0.0
      %219 = vmatpush1.xpose.msra.mxu0 %v192
      %220 = vmatprep.subr.mxu0 0.0
      %221 = vmatpush1.xpose.msra.mxu0 %v191
      %222 = vmatprep.subr.mxu0 0.0
      %223 = vmatpush1.xpose.msra.mxu0 %v190
      %224 = vmatprep.subr.mxu0 0.0
      %225 = vmatpush1.xpose.msra.mxu0 %v189
      %226 = vmatprep.subr.mxu0 0.0
      %227 = vmatpush1.xpose.msra.mxu0 %v188
      %228 = vmatprep.subr.mxu0 0.0
      %229 = vmatpush1.xpose.msra.mxu0 %v187
      %230 = vmatprep.subr.mxu0 0.0
      %231 = vmatpush1.xpose.msra.mxu0 %v186
      %232 = vmatprep.subr.mxu0 0.0
      %233 = vmatpush1.xpose.msra.mxu0 %v185
      %234 = vmatprep.subr.mxu0 0.0
      %235 = vmatpush1.xpose.msra.mxu0 %v184
      %236 = vmatprep.subr.mxu0 0.0
      %237 = vmatpush1.xpose.msra.mxu0 %v183
      %238 = vmatprep.subr.mxu0 0.0
      %239 = vmatpush1.xpose.msra.mxu0 %v182
      %240 = vmatprep.subr.mxu0 0.0
      %241 = vmatpush1.xpose.msra.mxu0 %v181
      %242 = vmatprep.subr.mxu0 0.0
      %243 = vmatpush1.xpose.msra.mxu0 %v180
      %244 = vmatprep.subr.mxu0 0.0
      %245 = vmatpush2.xpose.msra.mxu0 %v211
      %246 = vmatprep.subr.mxu0 0.0
      %247 = vmatpush2.xpose.msra.mxu0 %v210
      %248 = vmatprep.subr.mxu0 0.0
      %249 = vmatpush2.xpose.msra.mxu0 %v209
      %250 = vmatprep.subr.mxu0 0.0
      %251 = vmatpush2.xpose.msra.mxu0 %v208
      %252 = vmatprep.subr.mxu0 0.0
      %253 = vmatpush2.xpose.msra.mxu0 %v207
      %254 = vmatprep.subr.mxu0 0.0
      %255 = vmatpush2.xpose.msra.mxu0 %v206
      %256 = vmatprep.subr.mxu0 0.0
      %257 = vmatpush2.xpose.msra.mxu0 %v205
      %258 = vmatprep.subr.mxu0 0.0
      %259 = vmatpush2.xpose.msra.mxu0 %v204
      %260 = vmatprep.subr.mxu0 0.0
      %261 = vmatpush2.xpose.msra.mxu0 %v203
      %262 = vmatprep.subr.mxu0 0.0
      %263 = vmatpush2.xpose.msra.mxu0 %v202
      %264 = vmatprep.subr.mxu0 0.0
      %265 = vmatpush2.xpose.msra.mxu0 %v201
      %266 = vmatprep.subr.mxu0 0.0
      %267 = vmatpush2.xpose.msra.mxu0 %v200
      %268 = vmatprep.subr.mxu0 0.0
      %269 = vmatpush2.xpose.msra.mxu0 %v199
      %270 = vmatprep.subr.mxu0 0.0
      %271 = vmatpush2.xpose.msra.mxu0 %v198
      %272 = vmatprep.subr.mxu0 0.0
      %273 = vmatpush2.xpose.msra.mxu0 %v197
      %274 = vmatprep.subr.mxu0 0.0
      %275 = vmatpush2.xpose.msra.mxu0 %v196
      %276 = vmatprep.mubr.f32.mxu0 0.0
      %277 = vmatmul.mubr.f32.gmra.mxu0 %v174
      %v278 = vpop.f32.mrf.mxu0
      %v279 = vadd.f32 0.0, %v278
      %v280 = vpop.f32.mrf.mxu0
      %v281 = vadd.f32 0.0, %v280
      %282 = vmatprep.mubr.f32.mxu0 0.0
      %283 = vmatmul.mubr.f32.gmra.mxu0 %v175
      %v284 = vpop.f32.mrf.mxu0
      %v285 = vadd.f32 0.0, %v284
      %v286 = vpop.f32.mrf.mxu0
      %v287 = vadd.f32 0.0, %v286
      %288 = vdwg.mxu0
      %v290 = vlaneseq
      %v291 = vshrl.u32 %v290, 7
      %v292 = vsub.s32 0, %v291
      %v293 = vrot.slane %v179, %v292
      %v294 = vlaneseq
      %v295 = vshrl.u32 %v294, 7
      %v296 = vsub.s32 4, %v295
      %v297 = vrot.slane %v179, %v296
      %v300 = vlaneseq
      %v301 = vshrl.u32 %v300, 7
      %v302 = vsub.s32 0, %v301
      %v303 = vrot.slane %v293, %v302
      %v304 = vlaneseq
      %v305 = vshrl.u32 %v304, 7
      %v306 = vsub.s32 0, %v305
      %v307 = vrot.slane %v297, %v306
      %v308 = vsub.f32 %v279, %v303
      %v309 = vsub.f32 %v281, %v307
      %v310 = vsub.f32 %v285, %v303
      %v311 = vsub.f32 %v287, %v307
      %v312 = vmax.f32 %v308, %v309
      %313 = vmax.xlane.f32.xlu0 %v312
      %v314 = vpop.xlane.xlu0 %313
      %v315 = vmax.f32 %v310, %v311
      %316 = vmax.xlane.f32.xlu0 %v315
      %v317 = vpop.xlane.xlu0 %316
      %vm318 = vcmp.ge.f32.partialorder %v308, %v314
      %vm319 = vcmp.ge.f32.partialorder %v309, %v314
      %vm320 = vcmp.ge.f32.partialorder %v310, %v317
      %vm321 = vcmp.ge.f32.partialorder %v311, %v317
      %v322 = vsel %vm318, %v177, 256
      %v323 = vsel %vm319, %v178, 256
      %v324 = vsel %vm320, %v177, 256
      %v325 = vsel %vm321, %v178, 256
      %vm326 = vcmp.lt.s32.totalorder %v322, %v323
      %v327 = vsel %vm326, %v322, %v323
      %v328 = vand.u32 %v327, 65535
      %v329 = vshra.s32 %v327, 16
      %v330 = vcvt.s32.f32 %v328
      %v331 = vcvt.s32.f32 %v329
      %332 = vmin.xlane.f32.xlu0 %v331
      %v333 = vpop.xlane.xlu0 %332
      %vm334 = vcmp.eq.f32.partialorder %v331, %v333
      %v335 = vsel %vm334, %v330, inf
      %336 = vmin.xlane.f32.xlu0 %v335
      %v337 = vpop.xlane.xlu0 %336
      %v338 = vcvt.f32.s32 %v337
      %v339 = vcvt.f32.s32 %v333
      %v340 = vshll.u32 %v339, 16
      %v341 = vadd.s32 %v340, %v338
      %vm342 = vcmp.lt.s32.totalorder %v324, %v325
      %v343 = vsel %vm342, %v324, %v325
      %v344 = vand.u32 %v343, 65535
      %v345 = vshra.s32 %v343, 16
      %v346 = vcvt.s32.f32 %v344
      %v347 = vcvt.s32.f32 %v345
      %348 = vmin.xlane.f32.xlu0 %v347
      %v349 = vpop.xlane.xlu0 %348
      %vm350 = vcmp.eq.f32.partialorder %v347, %v349
      %v351 = vsel %vm350, %v346, inf
      %352 = vmin.xlane.f32.xlu0 %v351
      %v353 = vpop.xlane.xlu0 %352
      %v354 = vcvt.f32.s32 %v353
      %v355 = vcvt.f32.s32 %v349
      %v356 = vshll.u32 %v355, 16
      %v357 = vadd.s32 %v356, %v354
      %vm358 = vcmp.eq.s32.totalorder %v177, %v341
      %vm359 = vcmp.eq.s32.totalorder %v178, %v341
      %vm360 = vcmp.eq.s32.totalorder %v177, %v357
      %vm361 = vcmp.eq.s32.totalorder %v178, %v357
      %v362 = vsel %vm358, 1, 0
      %v363 = vsel %vm359, 1, 0
      %v364 = vsel %vm360, 1, 0
      %v365 = vsel %vm361, 1, 0
      %v366 = vcvt.s32.f32 %v362
      %v367 = vcvt.s32.f32 %v363
      %v368 = vcvt.s32.f32 %v364
      %v369 = vcvt.s32.f32 %v365
      %370 = vmatprep.subr.mxu0 0.0
      %371 = vmatpush1.msra.mxu0 %v195
      %372 = vmatprep.subr.mxu0 0.0
      %373 = vmatpush1.msra.mxu0 %v194
      %374 = vmatprep.subr.mxu0 0.0
      %375 = vmatpush1.msra.mxu0 %v193
      %376 = vmatprep.subr.mxu0 0.0
      %377 = vmatpush1.msra.mxu0 %v192
      %378 = vmatprep.subr.mxu0 0.0
      %379 = vmatpush1.msra.mxu0 %v191
      %380 = vmatprep.subr.mxu0 0.0
      %381 = vmatpush1.msra.mxu0 %v190
      %382 = vmatprep.subr.mxu0 0.0
      %383 = vmatpush1.msra.mxu0 %v189
      %384 = vmatprep.subr.mxu0 0.0
      %385 = vmatpush1.msra.mxu0 %v188
      %386 = vmatprep.subr.mxu0 0.0
      %387 = vmatpush1.msra.mxu0 %v187
      %388 = vmatprep.subr.mxu0 0.0
      %389 = vmatpush1.msra.mxu0 %v186
      %390 = vmatprep.subr.mxu0 0.0
      %391 = vmatpush1.msra.mxu0 %v185
      %392 = vmatprep.subr.mxu0 0.0
      %393 = vmatpush1.msra.mxu0 %v184
      %394 = vmatprep.subr.mxu0 0.0
      %395 = vmatpush1.msra.mxu0 %v183
      %396 = vmatprep.subr.mxu0 0.0
      %397 = vmatpush1.msra.mxu0 %v182
      %398 = vmatprep.subr.mxu0 0.0
      %399 = vmatpush1.msra.mxu0 %v181
      %400 = vmatprep.subr.mxu0 0.0
      %401 = vmatpush1.msra.mxu0 %v180
      %402 = vmatprep.subr.mxu0 0.0
      %403 = vmatpush2.msra.mxu0 %v211
      %404 = vmatprep.subr.mxu0 0.0
      %405 = vmatpush2.msra.mxu0 %v210
      %406 = vmatprep.subr.mxu0 0.0
      %407 = vmatpush2.msra.mxu0 %v209
      %408 = vmatprep.subr.mxu0 0.0
      %409 = vmatpush2.msra.mxu0 %v208
      %410 = vmatprep.subr.mxu0 0.0
      %411 = vmatpush2.msra.mxu0 %v207
      %412 = vmatprep.subr.mxu0 0.0
      %413 = vmatpush2.msra.mxu0 %v206
      %414 = vmatprep.subr.mxu0 0.0
      %415 = vmatpush2.msra.mxu0 %v205
      %416 = vmatprep.subr.mxu0 0.0
      %417 = vmatpush2.msra.mxu0 %v204
      %418 = vmatprep.subr.mxu0 0.0
      %419 = vmatpush2.msra.mxu0 %v203
      %420 = vmatprep.subr.mxu0 0.0
      %421 = vmatpush2.msra.mxu0 %v202
      %422 = vmatprep.subr.mxu0 0.0
      %423 = vmatpush2.msra.mxu0 %v201
      %424 = vmatprep.subr.mxu0 0.0
      %425 = vmatpush2.msra.mxu0 %v200
      %426 = vmatprep.subr.mxu0 0.0
      %427 = vmatpush2.msra.mxu0 %v199
      %428 = vmatprep.subr.mxu0 0.0
      %429 = vmatpush2.msra.mxu0 %v198
      %430 = vmatprep.subr.mxu0 0.0
      %431 = vmatpush2.msra.mxu0 %v197
      %432 = vmatprep.subr.mxu0 0.0
      %433 = vmatpush2.msra.mxu0 %v196
      %434 = vmatprep.mubr.f32.mxu0 %v367
      %435 = vmatmul.mubr.f32.gmra.mxu0 %v366
      %v436 = vpop.f32.mrf.mxu0
      %v437 = vadd.f32 0.0, %v436
      %v438 = vpop.f32.mrf.mxu0
      %439 = vmatprep.mubr.f32.mxu0 %v369
      %440 = vmatmul.mubr.f32.gmra.mxu0 %v368
      %v441 = vpop.f32.mrf.mxu0
      %v442 = vadd.f32 0.0, %v441
      %v443 = vpop.f32.mrf.mxu0
      %444 = vdwg.mxu0
      %v445 = vsub.f32 %v174, %v437
      %v446 = vsub.f32 %v175, %v442
      %vm447 = vcmp.eq.s32.totalorder %v177, 0
      %v448 = vsel %vm447, %v341, 0
      %v449 = vsel %vm447, %v357, 0
      %s450 = scalar_lea.vmem %s1, 256
      %v451 = vld [vmem:[%s450] sm:$0xff]
      %v452 = vld [vmem:[%s450 + $0x8] sm:$0xff]
      %v453 = vld [vmem:[%s450 + $0x10] sm:$0xff]
      %v454 = vld [vmem:[%s450 + $0x18] sm:$0xff]
      %v455 = vld [vmem:[%s450 + $0x20] sm:$0xff]
      %v456 = vld [vmem:[%s450 + $0x28] sm:$0xff]
      %v457 = vld [vmem:[%s450 + $0x30] sm:$0xff]
      %v458 = vld [vmem:[%s450 + $0x38] sm:$0xff]
      %v459 = vld [vmem:[%s450 + $0x40] sm:$0xff]
      %v460 = vld [vmem:[%s450 + $0x48] sm:$0xff]
      %v461 = vld [vmem:[%s450 + $0x50] sm:$0xff]
      %v462 = vld [vmem:[%s450 + $0x58] sm:$0xff]
      %v463 = vld [vmem:[%s450 + $0x60] sm:$0xff]
      %v464 = vld [vmem:[%s450 + $0x68] sm:$0xff]
      %v465 = vld [vmem:[%s450 + $0x70] sm:$0xff]
      %v466 = vld [vmem:[%s450 + $0x78] sm:$0xff]
      %v467 = vld [vmem:[%s450 + $0x80] sm:$0xff]
      %v468 = vld [vmem:[%s450 + $0x88] sm:$0xff]
      %v469 = vld [vmem:[%s450 + $0x90] sm:$0xff]
      %v470 = vld [vmem:[%s450 + $0x98] sm:$0xff]
      %v471 = vld [vmem:[%s450 + $0xa0] sm:$0xff]
      %v472 = vld [vmem:[%s450 + $0xa8] sm:$0xff]
      %v473 = vld [vmem:[%s450 + $0xb0] sm:$0xff]
      %v474 = vld [vmem:[%s450 + $0xb8] sm:$0xff]
      %v475 = vld [vmem:[%s450 + $0xc0] sm:$0xff]
      %v476 = vld [vmem:[%s450 + $0xc8] sm:$0xff]
      %v477 = vld [vmem:[%s450 + $0xd0] sm:$0xff]
      %v478 = vld [vmem:[%s450 + $0xd8] sm:$0xff]
      %v479 = vld [vmem:[%s450 + $0xe0] sm:$0xff]
      %v480 = vld [vmem:[%s450 + $0xe8] sm:$0xff]
      %v481 = vld [vmem:[%s450 + $0xf0] sm:$0xff]
      %v482 = vld [vmem:[%s450 + $0xf8] sm:$0xff]
      %483 = vmatprep.subr.mxu0 0.0
      %484 = vmatpush1.xpose.msra.mxu0 %v466
      %485 = vmatprep.subr.mxu0 0.0
      %486 = vmatpush1.xpose.msra.mxu0 %v465
      %487 = vmatprep.subr.mxu0 0.0
      %488 = vmatpush1.xpose.msra.mxu0 %v464
      %489 = vmatprep.subr.mxu0 0.0
      %490 = vmatpush1.xpose.msra.mxu0 %v463
      %491 = vmatprep.subr.mxu0 0.0
      %492 = vmatpush1.xpose.msra.mxu0 %v462
      %493 = vmatprep.subr.mxu0 0.0
      %494 = vmatpush1.xpose.msra.mxu0 %v461
      %495 = vmatprep.subr.mxu0 0.0
      %496 = vmatpush1.xpose.msra.mxu0 %v460
      %497 = vmatprep.subr.mxu0 0.0
      %498 = vmatpush1.xpose.msra.mxu0 %v459
      %499 = vmatprep.subr.mxu0 0.0
      %500 = vmatpush1.xpose.msra.mxu0 %v458
      %501 = vmatprep.subr.mxu0 0.0
      %502 = vmatpush1.xpose.msra.mxu0 %v457
      %503 = vmatprep.subr.mxu0 0.0
      %504 = vmatpush1.xpose.msra.mxu0 %v456
      %505 = vmatprep.subr.mxu0 0.0
      %506 = vmatpush1.xpose.msra.mxu0 %v455
      %507 = vmatprep.subr.mxu0 0.0
      %508 = vmatpush1.xpose.msra.mxu0 %v454
      %509 = vmatprep.subr.mxu0 0.0
      %510 = vmatpush1.xpose.msra.mxu0 %v453
      %511 = vmatprep.subr.mxu0 0.0
      %512 = vmatpush1.xpose.msra.mxu0 %v452
      %513 = vmatprep.subr.mxu0 0.0
      %514 = vmatpush1.xpose.msra.mxu0 %v451
      %515 = vmatprep.subr.mxu0 0.0
      %516 = vmatpush2.xpose.msra.mxu0 %v482
      %517 = vmatprep.subr.mxu0 0.0
      %518 = vmatpush2.xpose.msra.mxu0 %v481
      %519 = vmatprep.subr.mxu0 0.0
      %520 = vmatpush2.xpose.msra.mxu0 %v480
      %521 = vmatprep.subr.mxu0 0.0
      %522 = vmatpush2.xpose.msra.mxu0 %v479
      %523 = vmatprep.subr.mxu0 0.0
      %524 = vmatpush2.xpose.msra.mxu0 %v478
      %525 = vmatprep.subr.mxu0 0.0
      %526 = vmatpush2.xpose.msra.mxu0 %v477
      %527 = vmatprep.subr.mxu0 0.0
      %528 = vmatpush2.xpose.msra.mxu0 %v476
      %529 = vmatprep.subr.mxu0 0.0
      %530 = vmatpush2.xpose.msra.mxu0 %v475
      %531 = vmatprep.subr.mxu0 0.0
      %532 = vmatpush2.xpose.msra.mxu0 %v474
      %533 = vmatprep.subr.mxu0 0.0
      %534 = vmatpush2.xpose.msra.mxu0 %v473
      %535 = vmatprep.subr.mxu0 0.0
      %536 = vmatpush2.xpose.msra.mxu0 %v472
      %537 = vmatprep.subr.mxu0 0.0
      %538 = vmatpush2.xpose.msra.mxu0 %v471
      %539 = vmatprep.subr.mxu0 0.0
      %540 = vmatpush2.xpose.msra.mxu0 %v470
      %541 = vmatprep.subr.mxu0 0.0
      %542 = vmatpush2.xpose.msra.mxu0 %v469
      %543 = vmatprep.subr.mxu0 0.0
      %544 = vmatpush2.xpose.msra.mxu0 %v468
      %545 = vmatprep.subr.mxu0 0.0
      %546 = vmatpush2.xpose.msra.mxu0 %v467
      %547 = vmatprep.mubr.f32.mxu0 0.0
      %548 = vmatmul.mubr.f32.gmra.mxu0 %v445
      %v549 = vpop.f32.mrf.mxu0
      %v550 = vadd.f32 0.0, %v549
      %v551 = vpop.f32.mrf.mxu0
      %v552 = vadd.f32 0.0, %v551
      %553 = vmatprep.mubr.f32.mxu0 0.0
      %554 = vmatmul.mubr.f32.gmra.mxu0 %v446
      %v555 = vpop.f32.mrf.mxu0
      %v556 = vadd.f32 0.0, %v555
      %v557 = vpop.f32.mrf.mxu0
      %v558 = vadd.f32 0.0, %v557
      %559 = vdwg.mxu0
      %v560 = vlaneseq
      %v561 = vshrl.u32 %v560, 7
      %v562 = vsub.s32 1, %v561
      %v563 = vrot.slane %v179, %v562
      %v564 = vlaneseq
      %v565 = vshrl.u32 %v564, 7
      %v566 = vsub.s32 5, %v565
      %v567 = vrot.slane %v179, %v566
      %v570 = vlaneseq
      %v571 = vshrl.u32 %v570, 7
      %v572 = vsub.s32 1, %v571
      %v573 = vrot.slane %v563, %v572
      %v574 = vlaneseq
      %v575 = vshrl.u32 %v574, 7
      %v576 = vsub.s32 1, %v575
      %v577 = vrot.slane %v567, %v576
      %v578 = vsub.f32 %v550, %v573
      %v579 = vsub.f32 %v552, %v577
      %v580 = vsub.f32 %v556, %v573
      %v581 = vsub.f32 %v558, %v577
      %v582 = vmax.f32 %v578, %v579
      %583 = vmax.xlane.f32.xlu0 %v582
      %v584 = vpop.xlane.xlu0 %583
      %v585 = vmax.f32 %v580, %v581
      %586 = vmax.xlane.f32.xlu0 %v585
      %v587 = vpop.xlane.xlu0 %586
      %vm588 = vcmp.ge.f32.partialorder %v578, %v584
      %vm589 = vcmp.ge.f32.partialorder %v579, %v584
      %vm590 = vcmp.ge.f32.partialorder %v580, %v587
      %vm591 = vcmp.ge.f32.partialorder %v581, %v587
      %v592 = vsel %vm588, %v177, 256
      %v593 = vsel %vm589, %v178, 256
      %v594 = vsel %vm590, %v177, 256
      %v595 = vsel %vm591, %v178, 256
      %vm596 = vcmp.lt.s32.totalorder %v592, %v593
      %v597 = vsel %vm596, %v592, %v593
      %v598 = vand.u32 %v597, 65535
      %v599 = vshra.s32 %v597, 16
      %v600 = vcvt.s32.f32 %v598
      %v601 = vcvt.s32.f32 %v599
      %602 = vmin.xlane.f32.xlu0 %v601
      %v603 = vpop.xlane.xlu0 %602
      %vm604 = vcmp.eq.f32.partialorder %v601, %v603
      %v605 = vsel %vm604, %v600, inf
      %606 = vmin.xlane.f32.xlu0 %v605
      %v607 = vpop.xlane.xlu0 %606
      %v608 = vcvt.f32.s32 %v607
      %v609 = vcvt.f32.s32 %v603
      %v610 = vshll.u32 %v609, 16
      %v611 = vadd.s32 %v610, %v608
      %vm612 = vcmp.lt.s32.totalorder %v594, %v595
      %v613 = vsel %vm612, %v594, %v595
      %v614 = vand.u32 %v613, 65535
      %v615 = vshra.s32 %v613, 16
      %v616 = vcvt.s32.f32 %v614
      %v617 = vcvt.s32.f32 %v615
      %618 = vmin.xlane.f32.xlu0 %v617
      %v619 = vpop.xlane.xlu0 %618
      %vm620 = vcmp.eq.f32.partialorder %v617, %v619
      %v621 = vsel %vm620, %v616, inf
      %622 = vmin.xlane.f32.xlu0 %v621
      %v623 = vpop.xlane.xlu0 %622
      %v624 = vcvt.f32.s32 %v623
      %v625 = vcvt.f32.s32 %v619
      %v626 = vshll.u32 %v625, 16
      %v627 = vadd.s32 %v626, %v624
      %vm628 = vcmp.eq.s32.totalorder %v177, %v611
      %vm629 = vcmp.eq.s32.totalorder %v178, %v611
      %vm630 = vcmp.eq.s32.totalorder %v177, %v627
      %vm631 = vcmp.eq.s32.totalorder %v178, %v627
      %v632 = vsel %vm628, 1, 0
      %v633 = vsel %vm629, 1, 0
      %v634 = vsel %vm630, 1, 0
      %v635 = vsel %vm631, 1, 0
      %v636 = vcvt.s32.f32 %v632
      %v637 = vcvt.s32.f32 %v633
      %v638 = vcvt.s32.f32 %v634
      %v639 = vcvt.s32.f32 %v635
      %640 = vmatprep.subr.mxu0 0.0
      %641 = vmatpush1.msra.mxu0 %v466
      %642 = vmatprep.subr.mxu0 0.0
      %643 = vmatpush1.msra.mxu0 %v465
      %644 = vmatprep.subr.mxu0 0.0
      %645 = vmatpush1.msra.mxu0 %v464
      %646 = vmatprep.subr.mxu0 0.0
      %647 = vmatpush1.msra.mxu0 %v463
      %648 = vmatprep.subr.mxu0 0.0
      %649 = vmatpush1.msra.mxu0 %v462
      %650 = vmatprep.subr.mxu0 0.0
      %651 = vmatpush1.msra.mxu0 %v461
      %652 = vmatprep.subr.mxu0 0.0
      %653 = vmatpush1.msra.mxu0 %v460
      %654 = vmatprep.subr.mxu0 0.0
      %655 = vmatpush1.msra.mxu0 %v459
      %656 = vmatprep.subr.mxu0 0.0
      %657 = vmatpush1.msra.mxu0 %v458
      %658 = vmatprep.subr.mxu0 0.0
      %659 = vmatpush1.msra.mxu0 %v457
      %660 = vmatprep.subr.mxu0 0.0
      %661 = vmatpush1.msra.mxu0 %v456
      %662 = vmatprep.subr.mxu0 0.0
      %663 = vmatpush1.msra.mxu0 %v455
      %664 = vmatprep.subr.mxu0 0.0
      %665 = vmatpush1.msra.mxu0 %v454
      %666 = vmatprep.subr.mxu0 0.0
      %667 = vmatpush1.msra.mxu0 %v453
      %668 = vmatprep.subr.mxu0 0.0
      %669 = vmatpush1.msra.mxu0 %v452
      %670 = vmatprep.subr.mxu0 0.0
      %671 = vmatpush1.msra.mxu0 %v451
      %672 = vmatprep.subr.mxu0 0.0
      %673 = vmatpush2.msra.mxu0 %v482
      %674 = vmatprep.subr.mxu0 0.0
      %675 = vmatpush2.msra.mxu0 %v481
      %676 = vmatprep.subr.mxu0 0.0
      %677 = vmatpush2.msra.mxu0 %v480
      %678 = vmatprep.subr.mxu0 0.0
      %679 = vmatpush2.msra.mxu0 %v479
      %680 = vmatprep.subr.mxu0 0.0
      %681 = vmatpush2.msra.mxu0 %v478
      %682 = vmatprep.subr.mxu0 0.0
      %683 = vmatpush2.msra.mxu0 %v477
      %684 = vmatprep.subr.mxu0 0.0
      %685 = vmatpush2.msra.mxu0 %v476
      %686 = vmatprep.subr.mxu0 0.0
      %687 = vmatpush2.msra.mxu0 %v475
      %688 = vmatprep.subr.mxu0 0.0
      %689 = vmatpush2.msra.mxu0 %v474
      %690 = vmatprep.subr.mxu0 0.0
      %691 = vmatpush2.msra.mxu0 %v473
      %692 = vmatprep.subr.mxu0 0.0
      %693 = vmatpush2.msra.mxu0 %v472
      %694 = vmatprep.subr.mxu0 0.0
      %695 = vmatpush2.msra.mxu0 %v471
      %696 = vmatprep.subr.mxu0 0.0
      %697 = vmatpush2.msra.mxu0 %v470
      %698 = vmatprep.subr.mxu0 0.0
      %699 = vmatpush2.msra.mxu0 %v469
      %700 = vmatprep.subr.mxu0 0.0
      %701 = vmatpush2.msra.mxu0 %v468
      %702 = vmatprep.subr.mxu0 0.0
      %703 = vmatpush2.msra.mxu0 %v467
      %704 = vmatprep.mubr.f32.mxu0 %v637
      %705 = vmatmul.mubr.f32.gmra.mxu0 %v636
      %v706 = vpop.f32.mrf.mxu0
      %v707 = vadd.f32 0.0, %v706
      %v708 = vpop.f32.mrf.mxu0
      %709 = vmatprep.mubr.f32.mxu0 %v639
      %710 = vmatmul.mubr.f32.gmra.mxu0 %v638
      %v711 = vpop.f32.mrf.mxu0
      %v712 = vadd.f32 0.0, %v711
      %v713 = vpop.f32.mrf.mxu0
      %714 = vdwg.mxu0
      %v715 = vsub.f32 %v445, %v707
      %v716 = vsub.f32 %v446, %v712
      %vm717 = vcmp.eq.s32.totalorder %v177, 1
      %v718 = vsel %vm717, %v611, %v448
      %v719 = vsel %vm717, %v627, %v449
      %s720 = scalar_lea.vmem %s1, 512
      %v721 = vld [vmem:[%s720] sm:$0xff]
      %v722 = vld [vmem:[%s720 + $0x8] sm:$0xff]
      %v723 = vld [vmem:[%s720 + $0x10] sm:$0xff]
      %v724 = vld [vmem:[%s720 + $0x18] sm:$0xff]
      %v725 = vld [vmem:[%s720 + $0x20] sm:$0xff]
      %v726 = vld [vmem:[%s720 + $0x28] sm:$0xff]
      %v727 = vld [vmem:[%s720 + $0x30] sm:$0xff]
      %v728 = vld [vmem:[%s720 + $0x38] sm:$0xff]
      %v729 = vld [vmem:[%s720 + $0x40] sm:$0xff]
      %v730 = vld [vmem:[%s720 + $0x48] sm:$0xff]
      %v731 = vld [vmem:[%s720 + $0x50] sm:$0xff]
      %v732 = vld [vmem:[%s720 + $0x58] sm:$0xff]
      %v733 = vld [vmem:[%s720 + $0x60] sm:$0xff]
      %v734 = vld [vmem:[%s720 + $0x68] sm:$0xff]
      %v735 = vld [vmem:[%s720 + $0x70] sm:$0xff]
      %v736 = vld [vmem:[%s720 + $0x78] sm:$0xff]
      %v737 = vld [vmem:[%s720 + $0x80] sm:$0xff]
      %v738 = vld [vmem:[%s720 + $0x88] sm:$0xff]
      %v739 = vld [vmem:[%s720 + $0x90] sm:$0xff]
      %v740 = vld [vmem:[%s720 + $0x98] sm:$0xff]
      %v741 = vld [vmem:[%s720 + $0xa0] sm:$0xff]
      %v742 = vld [vmem:[%s720 + $0xa8] sm:$0xff]
      %v743 = vld [vmem:[%s720 + $0xb0] sm:$0xff]
      %v744 = vld [vmem:[%s720 + $0xb8] sm:$0xff]
      %v745 = vld [vmem:[%s720 + $0xc0] sm:$0xff]
      %v746 = vld [vmem:[%s720 + $0xc8] sm:$0xff]
      %v747 = vld [vmem:[%s720 + $0xd0] sm:$0xff]
      %v748 = vld [vmem:[%s720 + $0xd8] sm:$0xff]
      %v749 = vld [vmem:[%s720 + $0xe0] sm:$0xff]
      %v750 = vld [vmem:[%s720 + $0xe8] sm:$0xff]
      %v751 = vld [vmem:[%s720 + $0xf0] sm:$0xff]
      %v752 = vld [vmem:[%s720 + $0xf8] sm:$0xff]
      %753 = vmatprep.subr.mxu0 0.0
      %754 = vmatpush1.xpose.msra.mxu0 %v736
      %755 = vmatprep.subr.mxu0 0.0
      %756 = vmatpush1.xpose.msra.mxu0 %v735
      %757 = vmatprep.subr.mxu0 0.0
      %758 = vmatpush1.xpose.msra.mxu0 %v734
      %759 = vmatprep.subr.mxu0 0.0
      %760 = vmatpush1.xpose.msra.mxu0 %v733
      %761 = vmatprep.subr.mxu0 0.0
      %762 = vmatpush1.xpose.msra.mxu0 %v732
      %763 = vmatprep.subr.mxu0 0.0
      %764 = vmatpush1.xpose.msra.mxu0 %v731
      %765 = vmatprep.subr.mxu0 0.0
      %766 = vmatpush1.xpose.msra.mxu0 %v730
      %767 = vmatprep.subr.mxu0 0.0
      %768 = vmatpush1.xpose.msra.mxu0 %v729
      %769 = vmatprep.subr.mxu0 0.0
      %770 = vmatpush1.xpose.msra.mxu0 %v728
      %771 = vmatprep.subr.mxu0 0.0
      %772 = vmatpush1.xpose.msra.mxu0 %v727
      %773 = vmatprep.subr.mxu0 0.0
      %774 = vmatpush1.xpose.msra.mxu0 %v726
      %775 = vmatprep.subr.mxu0 0.0
      %776 = vmatpush1.xpose.msra.mxu0 %v725
      %777 = vmatprep.subr.mxu0 0.0
      %778 = vmatpush1.xpose.msra.mxu0 %v724
      %779 = vmatprep.subr.mxu0 0.0
      %780 = vmatpush1.xpose.msra.mxu0 %v723
      %781 = vmatprep.subr.mxu0 0.0
      %782 = vmatpush1.xpose.msra.mxu0 %v722
      %783 = vmatprep.subr.mxu0 0.0
      %784 = vmatpush1.xpose.msra.mxu0 %v721
      %785 = vmatprep.subr.mxu0 0.0
      %786 = vmatpush2.xpose.msra.mxu0 %v752
      %787 = vmatprep.subr.mxu0 0.0
      %788 = vmatpush2.xpose.msra.mxu0 %v751
      %789 = vmatprep.subr.mxu0 0.0
      %790 = vmatpush2.xpose.msra.mxu0 %v750
      %791 = vmatprep.subr.mxu0 0.0
      %792 = vmatpush2.xpose.msra.mxu0 %v749
      %793 = vmatprep.subr.mxu0 0.0
      %794 = vmatpush2.xpose.msra.mxu0 %v748
      %795 = vmatprep.subr.mxu0 0.0
      %796 = vmatpush2.xpose.msra.mxu0 %v747
      %797 = vmatprep.subr.mxu0 0.0
      %798 = vmatpush2.xpose.msra.mxu0 %v746
      %799 = vmatprep.subr.mxu0 0.0
      %800 = vmatpush2.xpose.msra.mxu0 %v745
      %801 = vmatprep.subr.mxu0 0.0
      %802 = vmatpush2.xpose.msra.mxu0 %v744
      %803 = vmatprep.subr.mxu0 0.0
      %804 = vmatpush2.xpose.msra.mxu0 %v743
      %805 = vmatprep.subr.mxu0 0.0
      %806 = vmatpush2.xpose.msra.mxu0 %v742
      %807 = vmatprep.subr.mxu0 0.0
      %808 = vmatpush2.xpose.msra.mxu0 %v741
      %809 = vmatprep.subr.mxu0 0.0
      %810 = vmatpush2.xpose.msra.mxu0 %v740
      %811 = vmatprep.subr.mxu0 0.0
      %812 = vmatpush2.xpose.msra.mxu0 %v739
      %813 = vmatprep.subr.mxu0 0.0
      %814 = vmatpush2.xpose.msra.mxu0 %v738
      %815 = vmatprep.subr.mxu0 0.0
      %816 = vmatpush2.xpose.msra.mxu0 %v737
      %817 = vmatprep.mubr.f32.mxu0 0.0
      %818 = vmatmul.mubr.f32.gmra.mxu0 %v715
      %v819 = vpop.f32.mrf.mxu0
      %v820 = vadd.f32 0.0, %v819
      %v821 = vpop.f32.mrf.mxu0
      %v822 = vadd.f32 0.0, %v821
      %823 = vmatprep.mubr.f32.mxu0 0.0
      %824 = vmatmul.mubr.f32.gmra.mxu0 %v716
      %v825 = vpop.f32.mrf.mxu0
      %v826 = vadd.f32 0.0, %v825
      %v827 = vpop.f32.mrf.mxu0
      %v828 = vadd.f32 0.0, %v827
      %829 = vdwg.mxu0
      %v830 = vlaneseq
      %v831 = vshrl.u32 %v830, 7
      %v832 = vsub.s32 2, %v831
      %v833 = vrot.slane %v179, %v832
      %v834 = vlaneseq
      %v835 = vshrl.u32 %v834, 7
      %v836 = vsub.s32 6, %v835
      %v837 = vrot.slane %v179, %v836
      %v840 = vlaneseq
      %v841 = vshrl.u32 %v840, 7
      %v842 = vsub.s32 2, %v841
      %v843 = vrot.slane %v833, %v842
      %v844 = vlaneseq
      %v845 = vshrl.u32 %v844, 7
      %v846 = vsub.s32 2, %v845
      %v847 = vrot.slane %v837, %v846
      %v848 = vsub.f32 %v820, %v843
      %v849 = vsub.f32 %v822, %v847
      %v850 = vsub.f32 %v826, %v843
      %v851 = vsub.f32 %v828, %v847
      %v852 = vmax.f32 %v848, %v849
      %853 = vmax.xlane.f32.xlu0 %v852
      %v854 = vpop.xlane.xlu0 %853
      %v855 = vmax.f32 %v850, %v851
      %856 = vmax.xlane.f32.xlu0 %v855
      %v857 = vpop.xlane.xlu0 %856
      %vm858 = vcmp.ge.f32.partialorder %v848, %v854
      %vm859 = vcmp.ge.f32.partialorder %v849, %v854
      %vm860 = vcmp.ge.f32.partialorder %v850, %v857
      %vm861 = vcmp.ge.f32.partialorder %v851, %v857
      %v862 = vsel %vm858, %v177, 256
      %v863 = vsel %vm859, %v178, 256
      %v864 = vsel %vm860, %v177, 256
      %v865 = vsel %vm861, %v178, 256
      %vm866 = vcmp.lt.s32.totalorder %v862, %v863
      %v867 = vsel %vm866, %v862, %v863
      %v868 = vand.u32 %v867, 65535
      %v869 = vshra.s32 %v867, 16
      %v870 = vcvt.s32.f32 %v868
      %v871 = vcvt.s32.f32 %v869
      %872 = vmin.xlane.f32.xlu0 %v871
      %v873 = vpop.xlane.xlu0 %872
      %vm874 = vcmp.eq.f32.partialorder %v871, %v873
      %v875 = vsel %vm874, %v870, inf
      %876 = vmin.xlane.f32.xlu0 %v875
      %v877 = vpop.xlane.xlu0 %876
      %v878 = vcvt.f32.s32 %v877
      %v879 = vcvt.f32.s32 %v873
      %v880 = vshll.u32 %v879, 16
      %v881 = vadd.s32 %v880, %v878
      %vm882 = vcmp.lt.s32.totalorder %v864, %v865
      %v883 = vsel %vm882, %v864, %v865
      %v884 = vand.u32 %v883, 65535
      %v885 = vshra.s32 %v883, 16
      %v886 = vcvt.s32.f32 %v884
      %v887 = vcvt.s32.f32 %v885
      %888 = vmin.xlane.f32.xlu0 %v887
      %v889 = vpop.xlane.xlu0 %888
      %vm890 = vcmp.eq.f32.partialorder %v887, %v889
      %v891 = vsel %vm890, %v886, inf
      %892 = vmin.xlane.f32.xlu0 %v891
      %v893 = vpop.xlane.xlu0 %892
      %v894 = vcvt.f32.s32 %v893
      %v895 = vcvt.f32.s32 %v889
      %v896 = vshll.u32 %v895, 16
      %v897 = vadd.s32 %v896, %v894
      %vm898 = vcmp.eq.s32.totalorder %v177, %v881
      %vm899 = vcmp.eq.s32.totalorder %v178, %v881
      %vm900 = vcmp.eq.s32.totalorder %v177, %v897
      %vm901 = vcmp.eq.s32.totalorder %v178, %v897
      %v902 = vsel %vm898, 1, 0
      %v903 = vsel %vm899, 1, 0
      %v904 = vsel %vm900, 1, 0
      %v905 = vsel %vm901, 1, 0
      %v906 = vcvt.s32.f32 %v902
      %v907 = vcvt.s32.f32 %v903
      %v908 = vcvt.s32.f32 %v904
      %v909 = vcvt.s32.f32 %v905
      %910 = vmatprep.subr.mxu0 0.0
      %911 = vmatpush1.msra.mxu0 %v736
      %912 = vmatprep.subr.mxu0 0.0
      %913 = vmatpush1.msra.mxu0 %v735
      %914 = vmatprep.subr.mxu0 0.0
      %915 = vmatpush1.msra.mxu0 %v734
      %916 = vmatprep.subr.mxu0 0.0
      %917 = vmatpush1.msra.mxu0 %v733
      %918 = vmatprep.subr.mxu0 0.0
      %919 = vmatpush1.msra.mxu0 %v732
      %920 = vmatprep.subr.mxu0 0.0
      %921 = vmatpush1.msra.mxu0 %v731
      %922 = vmatprep.subr.mxu0 0.0
      %923 = vmatpush1.msra.mxu0 %v730
      %924 = vmatprep.subr.mxu0 0.0
      %925 = vmatpush1.msra.mxu0 %v729
      %926 = vmatprep.subr.mxu0 0.0
      %927 = vmatpush1.msra.mxu0 %v728
      %928 = vmatprep.subr.mxu0 0.0
      %929 = vmatpush1.msra.mxu0 %v727
      %930 = vmatprep.subr.mxu0 0.0
      %931 = vmatpush1.msra.mxu0 %v726
      %932 = vmatprep.subr.mxu0 0.0
      %933 = vmatpush1.msra.mxu0 %v725
      %934 = vmatprep.subr.mxu0 0.0
      %935 = vmatpush1.msra.mxu0 %v724
      %936 = vmatprep.subr.mxu0 0.0
      %937 = vmatpush1.msra.mxu0 %v723
      %938 = vmatprep.subr.mxu0 0.0
      %939 = vmatpush1.msra.mxu0 %v722
      %940 = vmatprep.subr.mxu0 0.0
      %941 = vmatpush1.msra.mxu0 %v721
      %942 = vmatprep.subr.mxu0 0.0
      %943 = vmatpush2.msra.mxu0 %v752
      %944 = vmatprep.subr.mxu0 0.0
      %945 = vmatpush2.msra.mxu0 %v751
      %946 = vmatprep.subr.mxu0 0.0
      %947 = vmatpush2.msra.mxu0 %v750
      %948 = vmatprep.subr.mxu0 0.0
      %949 = vmatpush2.msra.mxu0 %v749
      %950 = vmatprep.subr.mxu0 0.0
      %951 = vmatpush2.msra.mxu0 %v748
      %952 = vmatprep.subr.mxu0 0.0
      %953 = vmatpush2.msra.mxu0 %v747
      %954 = vmatprep.subr.mxu0 0.0
      %955 = vmatpush2.msra.mxu0 %v746
      %956 = vmatprep.subr.mxu0 0.0
      %957 = vmatpush2.msra.mxu0 %v745
      %958 = vmatprep.subr.mxu0 0.0
      %959 = vmatpush2.msra.mxu0 %v744
      %960 = vmatprep.subr.mxu0 0.0
      %961 = vmatpush2.msra.mxu0 %v743
      %962 = vmatprep.subr.mxu0 0.0
      %963 = vmatpush2.msra.mxu0 %v742
      %964 = vmatprep.subr.mxu0 0.0
      %965 = vmatpush2.msra.mxu0 %v741
      %966 = vmatprep.subr.mxu0 0.0
      %967 = vmatpush2.msra.mxu0 %v740
      %968 = vmatprep.subr.mxu0 0.0
      %969 = vmatpush2.msra.mxu0 %v739
      %970 = vmatprep.subr.mxu0 0.0
      %971 = vmatpush2.msra.mxu0 %v738
      %972 = vmatprep.subr.mxu0 0.0
      %973 = vmatpush2.msra.mxu0 %v737
      %974 = vmatprep.mubr.f32.mxu0 %v907
      %975 = vmatmul.mubr.f32.gmra.mxu0 %v906
      %v976 = vpop.f32.mrf.mxu0
      %v977 = vadd.f32 0.0, %v976
      %v978 = vpop.f32.mrf.mxu0
      %979 = vmatprep.mubr.f32.mxu0 %v909
      %980 = vmatmul.mubr.f32.gmra.mxu0 %v908
      %v981 = vpop.f32.mrf.mxu0
      %v982 = vadd.f32 0.0, %v981
      %v983 = vpop.f32.mrf.mxu0
      %984 = vdwg.mxu0
      %v985 = vsub.f32 %v715, %v977
      %v986 = vsub.f32 %v716, %v982
      %vm987 = vcmp.eq.s32.totalorder %v177, 2
      %v988 = vsel %vm987, %v881, %v718
      %v989 = vsel %vm987, %v897, %v719
      %s990 = scalar_lea.vmem %s1, 768
      %v991 = vld [vmem:[%s990] sm:$0xff]
      %v992 = vld [vmem:[%s990 + $0x8] sm:$0xff]
      %v993 = vld [vmem:[%s990 + $0x10] sm:$0xff]
      %v994 = vld [vmem:[%s990 + $0x18] sm:$0xff]
      %v995 = vld [vmem:[%s990 + $0x20] sm:$0xff]
      %v996 = vld [vmem:[%s990 + $0x28] sm:$0xff]
      %v997 = vld [vmem:[%s990 + $0x30] sm:$0xff]
      %v998 = vld [vmem:[%s990 + $0x38] sm:$0xff]
      %v999 = vld [vmem:[%s990 + $0x40] sm:$0xff]
      %v1000 = vld [vmem:[%s990 + $0x48] sm:$0xff]
      %v1001 = vld [vmem:[%s990 + $0x50] sm:$0xff]
      %v1002 = vld [vmem:[%s990 + $0x58] sm:$0xff]
      %v1003 = vld [vmem:[%s990 + $0x60] sm:$0xff]
      %v1004 = vld [vmem:[%s990 + $0x68] sm:$0xff]
      %v1005 = vld [vmem:[%s990 + $0x70] sm:$0xff]
      %v1006 = vld [vmem:[%s990 + $0x78] sm:$0xff]
      %v1007 = vld [vmem:[%s990 + $0x80] sm:$0xff]
      %v1008 = vld [vmem:[%s990 + $0x88] sm:$0xff]
      %v1009 = vld [vmem:[%s990 + $0x90] sm:$0xff]
      %v1010 = vld [vmem:[%s990 + $0x98] sm:$0xff]
      %v1011 = vld [vmem:[%s990 + $0xa0] sm:$0xff]
      %v1012 = vld [vmem:[%s990 + $0xa8] sm:$0xff]
      %v1013 = vld [vmem:[%s990 + $0xb0] sm:$0xff]
      %v1014 = vld [vmem:[%s990 + $0xb8] sm:$0xff]
      %v1015 = vld [vmem:[%s990 + $0xc0] sm:$0xff]
      %v1016 = vld [vmem:[%s990 + $0xc8] sm:$0xff]
      %v1017 = vld [vmem:[%s990 + $0xd0] sm:$0xff]
      %v1018 = vld [vmem:[%s990 + $0xd8] sm:$0xff]
      %v1019 = vld [vmem:[%s990 + $0xe0] sm:$0xff]
      %v1020 = vld [vmem:[%s990 + $0xe8] sm:$0xff]
      %v1021 = vld [vmem:[%s990 + $0xf0] sm:$0xff]
      %v1022 = vld [vmem:[%s990 + $0xf8] sm:$0xff]
      %1023 = vmatprep.subr.mxu0 0.0
      %1024 = vmatpush1.xpose.msra.mxu0 %v1006
      %1025 = vmatprep.subr.mxu0 0.0
      %1026 = vmatpush1.xpose.msra.mxu0 %v1005
      %1027 = vmatprep.subr.mxu0 0.0
      %1028 = vmatpush1.xpose.msra.mxu0 %v1004
      %1029 = vmatprep.subr.mxu0 0.0
      %1030 = vmatpush1.xpose.msra.mxu0 %v1003
      %1031 = vmatprep.subr.mxu0 0.0
      %1032 = vmatpush1.xpose.msra.mxu0 %v1002
      %1033 = vmatprep.subr.mxu0 0.0
      %1034 = vmatpush1.xpose.msra.mxu0 %v1001
      %1035 = vmatprep.subr.mxu0 0.0
      %1036 = vmatpush1.xpose.msra.mxu0 %v1000
      %1037 = vmatprep.subr.mxu0 0.0
      %1038 = vmatpush1.xpose.msra.mxu0 %v999
      %1039 = vmatprep.subr.mxu0 0.0
      %1040 = vmatpush1.xpose.msra.mxu0 %v998
      %1041 = vmatprep.subr.mxu0 0.0
      %1042 = vmatpush1.xpose.msra.mxu0 %v997
      %1043 = vmatprep.subr.mxu0 0.0
      %1044 = vmatpush1.xpose.msra.mxu0 %v996
      %1045 = vmatprep.subr.mxu0 0.0
      %1046 = vmatpush1.xpose.msra.mxu0 %v995
      %1047 = vmatprep.subr.mxu0 0.0
      %1048 = vmatpush1.xpose.msra.mxu0 %v994
      %1049 = vmatprep.subr.mxu0 0.0
      %1050 = vmatpush1.xpose.msra.mxu0 %v993
      %1051 = vmatprep.subr.mxu0 0.0
      %1052 = vmatpush1.xpose.msra.mxu0 %v992
      %1053 = vmatprep.subr.mxu0 0.0
      %1054 = vmatpush1.xpose.msra.mxu0 %v991
      %1055 = vmatprep.subr.mxu0 0.0
      %1056 = vmatpush2.xpose.msra.mxu0 %v1022
      %1057 = vmatprep.subr.mxu0 0.0
      %1058 = vmatpush2.xpose.msra.mxu0 %v1021
      %1059 = vmatprep.subr.mxu0 0.0
      %1060 = vmatpush2.xpose.msra.mxu0 %v1020
      %1061 = vmatprep.subr.mxu0 0.0
      %1062 = vmatpush2.xpose.msra.mxu0 %v1019
      %1063 = vmatprep.subr.mxu0 0.0
      %1064 = vmatpush2.xpose.msra.mxu0 %v1018
      %1065 = vmatprep.subr.mxu0 0.0
      %1066 = vmatpush2.xpose.msra.mxu0 %v1017
      %1067 = vmatprep.subr.mxu0 0.0
      %1068 = vmatpush2.xpose.msra.mxu0 %v1016
      %1069 = vmatprep.subr.mxu0 0.0
      %1070 = vmatpush2.xpose.msra.mxu0 %v1015
      %1071 = vmatprep.subr.mxu0 0.0
      %1072 = vmatpush2.xpose.msra.mxu0 %v1014
      %1073 = vmatprep.subr.mxu0 0.0
      %1074 = vmatpush2.xpose.msra.mxu0 %v1013
      %1075 = vmatprep.subr.mxu0 0.0
      %1076 = vmatpush2.xpose.msra.mxu0 %v1012
      %1077 = vmatprep.subr.mxu0 0.0
      %1078 = vmatpush2.xpose.msra.mxu0 %v1011
      %1079 = vmatprep.subr.mxu0 0.0
      %1080 = vmatpush2.xpose.msra.mxu0 %v1010
      %1081 = vmatprep.subr.mxu0 0.0
      %1082 = vmatpush2.xpose.msra.mxu0 %v1009
      %1083 = vmatprep.subr.mxu0 0.0
      %1084 = vmatpush2.xpose.msra.mxu0 %v1008
      %1085 = vmatprep.subr.mxu0 0.0
      %1086 = vmatpush2.xpose.msra.mxu0 %v1007
      %1087 = vmatprep.mubr.f32.mxu0 0.0
      %1088 = vmatmul.mubr.f32.gmra.mxu0 %v985
      %v1089 = vpop.f32.mrf.mxu0
      %v1090 = vadd.f32 0.0, %v1089
      %v1091 = vpop.f32.mrf.mxu0
      %v1092 = vadd.f32 0.0, %v1091
      %1093 = vmatprep.mubr.f32.mxu0 0.0
      %1094 = vmatmul.mubr.f32.gmra.mxu0 %v986
      %v1095 = vpop.f32.mrf.mxu0
      %v1096 = vadd.f32 0.0, %v1095
      %v1097 = vpop.f32.mrf.mxu0
      %v1098 = vadd.f32 0.0, %v1097
      %1099 = vdwg.mxu0
      %v1100 = vlaneseq
      %v1101 = vshrl.u32 %v1100, 7
      %v1102 = vsub.s32 3, %v1101
      %v1103 = vrot.slane %v179, %v1102
      %v1104 = vlaneseq
      %v1105 = vshrl.u32 %v1104, 7
      %v1106 = vsub.s32 7, %v1105
      %v1107 = vrot.slane %v179, %v1106
      %v1110 = vlaneseq
      %v1111 = vshrl.u32 %v1110, 7
      %v1112 = vsub.s32 3, %v1111
      %v1113 = vrot.slane %v1103, %v1112
      %v1114 = vlaneseq
      %v1115 = vshrl.u32 %v1114, 7
      %v1116 = vsub.s32 3, %v1115
      %v1117 = vrot.slane %v1107, %v1116
      %v1118 = vsub.f32 %v1090, %v1113
      %v1119 = vsub.f32 %v1092, %v1117
      %v1120 = vsub.f32 %v1096, %v1113
      %v1121 = vsub.f32 %v1098, %v1117
      %v1122 = vmax.f32 %v1118, %v1119
      %1123 = vmax.xlane.f32.xlu0 %v1122
      %v1124 = vpop.xlane.xlu0 %1123
      %v1125 = vmax.f32 %v1120, %v1121
      %1126 = vmax.xlane.f32.xlu0 %v1125
      %v1127 = vpop.xlane.xlu0 %1126
      %vm1128 = vcmp.ge.f32.partialorder %v1118, %v1124
      %vm1129 = vcmp.ge.f32.partialorder %v1119, %v1124
      %vm1130 = vcmp.ge.f32.partialorder %v1120, %v1127
      %vm1131 = vcmp.ge.f32.partialorder %v1121, %v1127
      %v1132 = vsel %vm1128, %v177, 256
      %v1133 = vsel %vm1129, %v178, 256
      %v1134 = vsel %vm1130, %v177, 256
      %v1135 = vsel %vm1131, %v178, 256
      %vm1136 = vcmp.lt.s32.totalorder %v1132, %v1133
      %v1137 = vsel %vm1136, %v1132, %v1133
      %v1138 = vand.u32 %v1137, 65535
      %v1139 = vshra.s32 %v1137, 16
      %v1140 = vcvt.s32.f32 %v1138
      %v1141 = vcvt.s32.f32 %v1139
      %1142 = vmin.xlane.f32.xlu0 %v1141
      %v1143 = vpop.xlane.xlu0 %1142
      %vm1144 = vcmp.eq.f32.partialorder %v1141, %v1143
      %v1145 = vsel %vm1144, %v1140, inf
      %1146 = vmin.xlane.f32.xlu0 %v1145
      %v1147 = vpop.xlane.xlu0 %1146
      %v1148 = vcvt.f32.s32 %v1147
      %v1149 = vcvt.f32.s32 %v1143
      %v1150 = vshll.u32 %v1149, 16
      %v1151 = vadd.s32 %v1150, %v1148
      %vm1152 = vcmp.lt.s32.totalorder %v1134, %v1135
      %v1153 = vsel %vm1152, %v1134, %v1135
      %v1154 = vand.u32 %v1153, 65535
      %v1155 = vshra.s32 %v1153, 16
      %v1156 = vcvt.s32.f32 %v1154
      %v1157 = vcvt.s32.f32 %v1155
      %1158 = vmin.xlane.f32.xlu0 %v1157
      %v1159 = vpop.xlane.xlu0 %1158
      %vm1160 = vcmp.eq.f32.partialorder %v1157, %v1159
      %v1161 = vsel %vm1160, %v1156, inf
      %1162 = vmin.xlane.f32.xlu0 %v1161
      %v1163 = vpop.xlane.xlu0 %1162
      %v1164 = vcvt.f32.s32 %v1163
      %v1165 = vcvt.f32.s32 %v1159
      %v1166 = vshll.u32 %v1165, 16
      %v1167 = vadd.s32 %v1166, %v1164
      %vm1168 = vcmp.eq.s32.totalorder %v177, 3
      %v1169 = vsel %vm1168, %v1151, %v988
      %v1170 = vsel %vm1168, %v1167, %v989
      %vm1171 = vcmask 31744
      %1172 = vst.msk [vmem:[%s172] sm:$0xff] %vm1171, %v1169
      %1173 = vst.msk [vmem:[%s172 + $0x8] sm:$0xff] %vm1171, %v1170
      %s1174 = smul.u32 2, %s14
      %p1175 = scmp.lt.s32.totalorder %s1174, 3
      %s1176 = scalar_select %p1175, %s1174, 3
      %s1177 = smul.addr %s1176, 8
      %s1178 = scalar_lea.vmem %s3, %s1177
      // Predicated region
      $region33: #{residual_vq_forward.1} parent=31 // pred_check
        %p1179 = pneg %p100
      $region34: #{residual_vq_forward.1} parent=31 // pred_check_branch
        %1181 = sbr.rel (%p1179) target = $region36
      $region35: #{residual_vq_forward.1} parent=31 // pred_region
        %s1182 = smul.u32 2, %s14
      $region36: #{residual_vq_forward.1} parent=31 // pred_fallthru
        _
    $region32: #{residual_vq_forward.1} parent=5 // pred_fallthru
      _
    %p1183 = scmp.le.s32.totalorder 2, %s9
    // Predicated region
    $region37: #{residual_vq_forward.1} parent=5 // pred_check
      %p1184 = pneg %p1183
    $region38: #{residual_vq_forward.1} parent=5 // pred_check_branch
      %1186 = sbr.rel (%p1184) target = $region40
    $region39: #{residual_vq_forward.1} parent=5 // pred_region
      %s1187 = ssub.s32 %s9, 2
      // Predicated region
      $region41: #{residual_vq_forward.1} parent=39 // pred_check
        %p1188 = pneg %p106
      $region42: #{residual_vq_forward.1} parent=39 // pred_check_branch
        %1190 = sbr.rel (%p1188) target = $region44
      $region43: #{residual_vq_forward.1} parent=39 // pred_region
        %s1191 = smul.u32 2, %s15
        %p1192 = scmp.lt.s32.totalorder %s1191, 3
        %s1193 = scalar_select %p1192, %s1191, 3
        %s1194 = smul.addr %s1193, 8
        %s1195 = scalar_lea.vmem %s3, %s1194
      $region44: #{residual_vq_forward.1} parent=39 // pred_fallthru
        _
    $region40: #{residual_vq_forward.1} parent=5 // pred_fallthru
      _
  $region6: #{residual_vq_forward.1} parent=0 // loop_footer
    %s13 = sadd.s32 1, %s9
  $region7: #{residual_vq_forward.1} parent=0 // loop_footer_branch
    %8 = sbr.rel target = $region3
  $region8: #{residual_vq_forward.1} parent=0 // loop_exit
    _

</llo_original>
